<compile_context>
chip_gen: v7x
topology: tpu7x:2x2x1
jax: 0.10.0
libtpu: 0.0.40
codegen_flags: <defaults>
</compile_context>

<pallas_src>
import math
import functools

import jax
import jax.numpy as jnp
from jax import lax
from jax.experimental import pallas as pl
from jax.experimental.pallas import tpu as pltpu


NEG_INF = -1e30  # large finite negative; exp() underflows to exactly 0 in f32
VMEM_LIMIT = 48 * 1024 * 1024  # <= 48 MiB: leaves headroom on v7x (64 MiB/TC)


def _pick_tile(dim, target):
    """Largest tile <= target that divides dim (falls back to full dim)."""
    if dim <= target:
        return dim
    t = target
    while t > 1 and dim % t != 0:
        t //= 2
    return t if dim % t == 0 else dim


# -----------------------------------------------------------------------------
# Tiled linear kernel:  y = x @ w.T   (PyTorch nn.Linear weight layout)
# -----------------------------------------------------------------------------
def _linear_kernel(x_ref, w_ref, o_ref, acc_ref):
    @pl.when(pl.program_id(2) == 0)
    def _init():
        acc_ref[...] = jnp.zeros_like(acc_ref)

    # x: (tm, tk), w: (tn, tk) -> contract last dims of both (no transpose).
    acc_ref[...] += lax.dot_general(
        x_ref[...], w_ref[...],
        dimension_numbers=(((1,), (1,)), ((), ())),
        preferred_element_type=jnp.float32,
    )

    @pl.when(pl.program_id(2) == pl.num_programs(2) - 1)
    def _finalize():
        o_ref[...] = acc_ref[...].astype(o_ref.dtype)


def pallas_linear(x2d, w, *, tm=256, tn=256, tk=512):
    """x2d: (M, K), w: (N, K)  ->  (M, N)."""
    M, K = x2d.shape
    N, K2 = w.shape
    assert K == K2
    tm = _pick_tile(M, tm)
    tn = _pick_tile(N, tn)
    tk = _pick_tile(K, tk)
    grid = (M // tm, N // tn, K // tk)
    return pl.pallas_call(
        _linear_kernel,
        out_shape=jax.ShapeDtypeStruct((M, N), x2d.dtype),
        grid=grid,
        in_specs=[
            pl.BlockSpec((tm, tk), lambda i, j, k: (i, k)),
            pl.BlockSpec((tn, tk), lambda i, j, k: (j, k)),
        ],
        out_specs=pl.BlockSpec((tm, tn), lambda i, j, k: (i, j)),
        scratch_shapes=[pltpu.VMEM((tm, tn), jnp.float32)],
        compiler_params=pltpu.CompilerParams(
            dimension_semantics=("parallel", "parallel", "arbitrary"),
            vmem_limit_bytes=VMEM_LIMIT,
        ),
    )(x2d, w)


# -----------------------------------------------------------------------------
# Flash-attention SDPA kernel
#   grid = (B, n_kv_heads, T) where T enumerates only the (qi, ki) tile pairs
#   that are needed (lower triangle if causal), via scalar-prefetched tables.
#   Each step handles all n_rep query heads of the GQA group sharing kv head.
# -----------------------------------------------------------------------------
def _flash_kernel(qi_ref, ki_ref,                  # scalar-prefetch (SMEM)
                  q_ref, k_ref, v_ref, o_ref,      # tiles (VMEM)
                  m_ref, l_ref, acc_ref,           # scratch (VMEM)
                  *, tq, tkv, hd, n_rep, causal, num_kv_tiles):
    t = pl.program_id(2)
    qi = qi_ref[t]
    ki = ki_ref[t]

    @pl.when(ki == 0)
    def _init():
        m_ref[...] = jnp.full_like(m_ref, NEG_INF)
        l_ref[...] = jnp.zeros_like(l_ref)
        acc_ref[...] = jnp.zeros_like(acc_ref)

    # q_ref: (n_rep, tq, hd) -> flatten the GQA group into the row dim so both
    # matmuls are plain 2-D MXU contractions (no batching, no transposes).
    q = q_ref[...].reshape(n_rep * tq, hd)
    k = k_ref[...]                                  # (tkv, hd)
    s = lax.dot_general(                            # (n_rep*tq, tkv), fp32
        q, k, dimension_numbers=(((1,), (1,)), ((), ())),
        preferred_element_type=jnp.float32,
    )

    if causal:
        # Only diagonal-straddling tiles need the compare/select mask; fully
        # lower-triangle interior tiles skip the VALU work entirely.
        needs_mask = (ki + 1) * tkv - 1 > qi * tq

        def _mask(sc):
            row = lax.broadcasted_iota(jnp.int32, sc.shape, 0)
            q_pos = qi * tq + row % tq
            k_pos = ki * tkv + lax.broadcasted_iota(jnp.int32, sc.shape, 1)
            return jnp.where(q_pos >= k_pos, sc, NEG_INF)

        s = lax.cond(needs_mask, _mask, lambda sc: sc, s)

    m_prev = m_ref[...]
    m_cur = jnp.max(s, axis=-1, keepdims=True)
    m_new = jnp.maximum(m_prev, m_cur)
    alpha = jnp.exp(m_prev - m_new)
    p = jnp.exp(s - m_new)
    l_ref[...] = alpha * l_ref[...] + jnp.sum(p, axis=-1, keepdims=True)
    acc_ref[...] = alpha * acc_ref[...] + lax.dot_general(
        p.astype(v_ref.dtype), v_ref[...],
        dimension_numbers=(((1,), (0,)), ((), ())),
        preferred_element_type=jnp.float32,
    )
    m_ref[...] = m_new

    # Last kv tile for this q tile (schedule enumerates ki = 0..last_ki).
    if causal:
        last_ki = ((qi + 1) * tq - 1) // tkv
    else:
        last_ki = num_kv_tiles - 1

    @pl.when(ki == last_ki)
    def _finalize():
        out = acc_ref[...] * pl.reciprocal(l_ref[...], approx=True)
        o_ref[...] = out.reshape(n_rep, tq, hd).astype(o_ref.dtype)


def pallas_flash_attention(q, k, v, *, causal=True, tq_target=256, tkv_target=512):
    """q: (B, H, S, hd); k, v: (B, Hkv, Skv, hd) with Hkv | H (GQA shared).

    The 1/sqrt(hd) scale is expected to already be folded into q (or wq)."""
    B, H, S, hd = q.shape
    _, Hkv, Skv, _ = k.shape
    assert H % Hkv == 0
    n_rep = H // Hkv
    tq = _pick_tile(S, tq_target)
    tkv = _pick_tile(Skv, tkv_target)
    n_q = S // tq
    n_kv = Skv // tkv

    # Host-side (trace-time) tile schedule: only the tiles we actually need.
    qi_list, ki_list = [], []
    for qi in range(n_q):
        last = ((qi + 1) * tq - 1) // tkv if causal else n_kv - 1
        for ki in range(last + 1):
            qi_list.append(qi)
            ki_list.append(ki)
    qi_tbl = jnp.asarray(qi_list, dtype=jnp.int32)
    ki_tbl = jnp.asarray(ki_list, dtype=jnp.int32)
    T = len(qi_list)

    kernel = functools.partial(
        _flash_kernel, tq=tq, tkv=tkv, hd=hd, n_rep=n_rep,
        causal=causal, num_kv_tiles=n_kv)

    q_spec = pl.BlockSpec((None, n_rep, tq, hd),
                          lambda b, hk, t, qi_r, ki_r: (b, hk, qi_r[t], 0))
    kv_spec = pl.BlockSpec((None, None, tkv, hd),
                           lambda b, hk, t, qi_r, ki_r: (b, hk, ki_r[t], 0))
    o_spec = pl.BlockSpec((None, n_rep, tq, hd),
                          lambda b, hk, t, qi_r, ki_r: (b, hk, qi_r[t], 0))

    return pl.pallas_call(
        kernel,
        out_shape=jax.ShapeDtypeStruct((B, H, S, hd), q.dtype),
        grid_spec=pltpu.PrefetchScalarGridSpec(
            num_scalar_prefetch=2,
            grid=(B, Hkv, T),
            in_specs=[q_spec, kv_spec, kv_spec],
            out_specs=o_spec,
            scratch_shapes=[
                pltpu.VMEM((n_rep * tq, 1), jnp.float32),    # running max
                pltpu.VMEM((n_rep * tq, 1), jnp.float32),    # running sum
                pltpu.VMEM((n_rep * tq, hd), jnp.float32),   # output accumulator
            ],
        ),
        compiler_params=pltpu.CompilerParams(
            dimension_semantics=("parallel", "parallel", "arbitrary"),
            vmem_limit_bytes=VMEM_LIMIT,
        ),
    )(qi_tbl, ki_tbl, q, k, v)


# -----------------------------------------------------------------------------
# JAX glue (RoPE) — matches the PyTorch reference semantics
# -----------------------------------------------------------------------------
def precompute_freqs(head_dim, seqlen, theta):
    freqs = 1.0 / (
        theta ** (jnp.arange(0, head_dim, 2, dtype=jnp.float32) / head_dim)
    )
    t = jnp.arange(seqlen, dtype=jnp.float32)
    angles = jnp.outer(t, freqs)  # (S, hd/2)
    return jnp.cos(angles), jnp.sin(angles)


def apply_rotary_emb(xq, xk, cos, sin):
    # (B, S, H, hd); complex multiply on interleaved (even, odd) pairs.
    def rot(x):
        xr = x.astype(jnp.float32).reshape(*x.shape[:-1], -1, 2)
        xe, xo = xr[..., 0], xr[..., 1]
        c = cos[None, :, None, :]
        s = sin[None, :, None, :]
        oe = xe * c - xo * s
        oo = xe * s + xo * c
        return jnp.stack([oe, oo], axis=-1).reshape(x.shape).astype(x.dtype)

    return rot(xq), rot(xk)


def repeat_kv(x, n_rep):
    if n_rep == 1:
        return x
    return jnp.repeat(x, n_rep, axis=2)


# -----------------------------------------------------------------------------
# One-time parameter prep (hoisted out of the per-call forward pass):
#   * softmax scale folded into wq (weight transform)
#   * QKV weights pre-fused into a single [wq_scaled; wk; wv] matrix
# -----------------------------------------------------------------------------
def prepare_attention_params(params, head_dim):
    scale = 1.0 / math.sqrt(head_dim)
    wqkv = jnp.concatenate(
        [params["wq"] * scale, params["wk"], params["wv"]], axis=0)
    return {"wqkv": wqkv, "wo": params["wo"]}


# -----------------------------------------------------------------------------
# Attention forward (Pallas-backed)
# -----------------------------------------------------------------------------
def attention_forward(x, cos, sin, prepared, n_heads, n_kv_heads, causal=True):
    B, S, D = x.shape
    head_dim = D // n_heads

    # Fused QKV projection: one pass over x, scale already inside wq.
    x2d = x.reshape(B * S, D)
    qkv = pallas_linear(x2d, prepared["wqkv"])
    q_sz = n_heads * head_dim
    kv_sz = n_kv_heads * head_dim
    xq = qkv[:, :q_sz].reshape(B, S, n_heads, head_dim)
    xk = qkv[:, q_sz:q_sz + kv_sz].reshape(B, S, n_kv_heads, head_dim)
    xv = qkv[:, q_sz + kv_sz:].reshape(B, S, n_kv_heads, head_dim)

    xq, xk = apply_rotary_emb(xq, xk, cos, sin)

    # K/V kept at n_kv_heads (no repeat_kv): the SDPA grid processes the whole
    # GQA group per step so each kv head is streamed from HBM once per group.
    q = jnp.transpose(xq, (0, 2, 1, 3))                # (B, H, S, hd)
    k = jnp.transpose(xk, (0, 2, 1, 3))                # (B, Hkv, S, hd)
    v = jnp.transpose(xv, (0, 2, 1, 3))                # (B, Hkv, S, hd)

    attn = pallas_flash_attention(q, k, v, causal=causal)
    attn = jnp.transpose(attn, (0, 2, 1, 3)).reshape(B * S, n_heads * head_dim)
    out = pallas_linear(attn, prepared["wo"])
    return out.reshape(B, S, D)


# -----------------------------------------------------------------------------
# Pure-JAX reference (for correctness check) — explicit additive causal mask
# -----------------------------------------------------------------------------
def attention_reference(x, cos, sin, attn_mask, params, n_heads, n_kv_heads):
    B, S, D = x.shape
    head_dim = D // n_heads
    n_rep = n_heads // n_kv_heads
    scale = 1.0 / math.sqrt(head_dim)

    xq = (x @ params["wq"].T).reshape(B, S, n_heads, head_dim)
    xk = (x @ params["wk"].T).reshape(B, S, n_kv_heads, head_dim)
    xv = (x @ params["wv"].T).reshape(B, S, n_kv_heads, head_dim)
    xq, xk = apply_rotary_emb(xq, xk, cos, sin)
    k = jnp.transpose(repeat_kv(xk, n_rep), (0, 2, 1, 3))
    v = jnp.transpose(repeat_kv(xv, n_rep), (0, 2, 1, 3))
    q = jnp.transpose(xq, (0, 2, 1, 3))
    scores = jnp.einsum("bhqd,bhkd->bhqk", q, k) * scale + attn_mask
    p = jax.nn.softmax(scores, axis=-1)
    o = jnp.einsum("bhqk,bhkd->bhqd", p, v)
    o = jnp.transpose(o, (0, 2, 1, 3)).reshape(B, S, -1)
    return o @ params["wo"].T


# -----------------------------------------------------------------------------
# Main
# -----------------------------------------------------------------------------
if __name__ == "__main__":
    # Small ModelArgs-consistent config: dim=32, n_heads=4, n_kv_heads=2 (GQA).
    B, S, D = 2, 8, 32
    n_heads, n_kv_heads = 4, 2
    head_dim = D // n_heads
    rope_theta = 500000.0

    key = jax.random.PRNGKey(0)
    kx, kq, kk, kv, ko = jax.random.split(key, 5)

    x = jax.random.normal(kx, (B, S, D), dtype=jnp.float32)
    init_scale = 0.05
    params = {
        "wq": init_scale * jax.random.normal(kq, (n_heads * head_dim, D), jnp.float32),
        "wk": init_scale * jax.random.normal(kk, (n_kv_heads * head_dim, D), jnp.float32),
        "wv": init_scale * jax.random.normal(kv, (n_kv_heads * head_dim, D), jnp.float32),
        "wo": init_scale * jax.random.normal(ko, (D, n_heads * head_dim), jnp.float32),
    }

    cos, sin = precompute_freqs(head_dim, S, rope_theta)

    # One-time weight prep (scale fold + QKV fuse) — hoisted out of forward.
    prepared = jax.block_until_ready(prepare_attention_params(params, head_dim))

    # Pallas path: causal masking generated inside the kernel.
    out = attention_forward(x, cos, sin, prepared, n_heads, n_kv_heads, causal=True)
    out = jax.block_until_ready(out)

    # Reference path: equivalent additive causal mask.
    causal_bool = jnp.tril(jnp.ones((S, S), dtype=bool))
    attn_mask = jnp.where(causal_bool, 0.0, -1e9).astype(jnp.float32)[None, None, :, :]
    ref = attention_reference(x, cos, sin, attn_mask, params, n_heads, n_kv_heads)

    assert out.shape == (B, S, D)
    assert jnp.allclose(out, ref, atol=2e-3, rtol=2e-3), (
        float(jnp.max(jnp.abs(out - ref)))
    )

    print("KERNEL_OK")
</pallas_src>

<mosaic_0001>
module attributes {stable_mosaic.version = 11 : i64} {
  func.func @_linear_kernel(%arg0: i32, %arg1: i32, %arg2: i32, %arg3: memref<16x32xf32, #tpu.memory_space<vmem>>, %arg4: memref<64x32xf32, #tpu.memory_space<vmem>>, %arg5: memref<16x64xf32, #tpu.memory_space<vmem>>, %arg6: memref<16x64xf32, #tpu.memory_space<vmem>>) attributes {dimension_semantics = [#tpu.dimension_semantics<parallel>, #tpu.dimension_semantics<parallel>, #tpu.dimension_semantics<arbitrary>], iteration_bounds = array<i64: 1, 1, 1>, scalar_prefetch = 0 : i64, scratch_operands = 1 : i64, tpu.core_type = #tpu.core_type<tc>, window_params = [{transform_indices = @transform_0, window_bounds = array<i64: 16, 32>}, {transform_indices = @transform_1, window_bounds = array<i64: 64, 32>}, {transform_indices = @transform_2, window_bounds = array<i64: 16, 64>}]} {
    %c0_i32 = arith.constant 0 : i32
    %0 = arith.cmpi eq, %arg2, %c0_i32 : i32
    %1 = arith.extui %0 : i1 to i32
    %c0_i32_0 = arith.constant 0 : i32
    %2 = arith.cmpi ne, %1, %c0_i32_0 : i32
    scf.if %2 {
      %cst_10 = arith.constant 0.000000e+00 : f32
      %12 = vector.broadcast %cst_10 : f32 to vector<16x64xf32>
      %c0_11 = arith.constant 0 : index
      %c0_12 = arith.constant 0 : index
      %13 = vector.load %arg6[%c0_11, %c0_12] : memref<16x64xf32, #tpu.memory_space<vmem>>, vector<16x64xf32>
      tpu.vector_store %arg6[%c0_11, %c0_12], %12 {strides = array<i32>} : memref<16x64xf32, #tpu.memory_space<vmem>>, vector<16x64xf32>,
    } else {
    }
    %c0 = arith.constant 0 : index
    %c0_1 = arith.constant 0 : index
    %3 = vector.load %arg6[%c0, %c0_1] : memref<16x64xf32, #tpu.memory_space<vmem>>, vector<16x64xf32>
    %c0_2 = arith.constant 0 : index
    %c0_3 = arith.constant 0 : index
    %4 = vector.load %arg3[%c0_2, %c0_3] : memref<16x32xf32, #tpu.memory_space<vmem>>, vector<16x32xf32>
    %c0_4 = arith.constant 0 : index
    %c0_5 = arith.constant 0 : index
    %5 = vector.load %arg4[%c0_4, %c0_5] : memref<64x32xf32, #tpu.memory_space<vmem>>, vector<64x32xf32>
    %cst = arith.constant dense<0.000000e+00> : vector<16x64xf32>
    %6 = tpu.matmul %4, %5, %cst {dimension_numbers = #tpu.dot_dimension_numbers<[1], [1], [0], [0], [0, 0, 1, 0], [], []>} : vector<16x32xf32>, vector<64x32xf32>, vector<16x64xf32> -> vector<16x64xf32>
    %7 = arith.addf %3, %6 : vector<16x64xf32>
    %c0_6 = arith.constant 0 : index
    %c0_7 = arith.constant 0 : index
    %8 = vector.load %arg6[%c0_6, %c0_7] : memref<16x64xf32, #tpu.memory_space<vmem>>, vector<16x64xf32>
    tpu.vector_store %arg6[%c0_6, %c0_7], %7 {strides = array<i32>} : memref<16x64xf32, #tpu.memory_space<vmem>>, vector<16x64xf32>,
    %c0_i32_8 = arith.constant 0 : i32
    %9 = arith.cmpi eq, %arg2, %c0_i32_8 : i32
    %10 = arith.extui %9 : i1 to i32
    %c0_i32_9 = arith.constant 0 : i32
    %11 = arith.cmpi ne, %10, %c0_i32_9 : i32
    scf.if %11 {
      %c0_10 = arith.constant 0 : index
      %c0_11 = arith.constant 0 : index
      %12 = vector.load %arg6[%c0_10, %c0_11] : memref<16x64xf32, #tpu.memory_space<vmem>>, vector<16x64xf32>
      %c0_12 = arith.constant 0 : index
      %c0_13 = arith.constant 0 : index
      %13 = vector.load %arg5[%c0_12, %c0_13] : memref<16x64xf32, #tpu.memory_space<vmem>>, vector<16x64xf32>
      tpu.vector_store %arg5[%c0_12, %c0_13], %12 {strides = array<i32>} : memref<16x64xf32, #tpu.memory_space<vmem>>, vector<16x64xf32>,
    } else {
    }
    return
  }
  func.func @transform_0(%arg0: i32, %arg1: i32, %arg2: i32) -> (i32, i32) {
    %c0_i32 = arith.constant 0 : i32
    return %arg0, %arg2 : i32, i32
  }
  func.func @transform_1(%arg0: i32, %arg1: i32, %arg2: i32) -> (i32, i32) {
    %c0_i32 = arith.constant 0 : i32
    return %arg1, %arg2 : i32, i32
  }
  func.func @transform_2(%arg0: i32, %arg1: i32, %arg2: i32) -> (i32, i32) {
    %c0_i32 = arith.constant 0 : i32
    return %arg0, %arg1 : i32, i32
  }
}

</mosaic_0001>

<llo_original>
// kernel: tpu_custom_call.1
$region0: #{tpu_custom_call.1}
  #allocation0 [shape = 'u32[]', space=smem, size = 0x4, offset = 0x4, fixed_abs, tag = 'smem constant byte address 0x4 - core index']
  #allocation1 [shape = 'u32[144,128]{1,0:T(1,128)}', space=vmem, size = 0x12000, scoped, tag = 'internal scratch']
  #allocation2 [shape = 'f32[16,64]{1,0:T(8,128)}', space=vmem, size = 0x2000, scoped, tag = 'scratch operand']
  %s0 = inlined_call_operand.vmem [shape: f32[16,32], index: 0, kind: input, shape index: {}]
  %s1 = inlined_call_operand.vmem [shape: f32[64,32], index: 1, kind: input, shape index: {}]
  %s2 = inlined_call_operand.hbm [shape: f32[16,64], index: 2, kind: output, shape index: {}]
  %s3 = sld [smem:[#allocation0]]
  $region26: #{tpu_custom_call.1} parent=0
    _
  %s5 = ssub.s32 1, %s3
  %s6 = scalar_select 0, %s5, %s3
  $region1: #{tpu_custom_call.1} parent=0
    #allocation3 [shape = 'u8[8192]{0}', space=vmem, size = 0x2000, scoped, tag = 'output window, operand 0, single buffered']
    #allocation4 [shape = 's32[1]{0}', space=sflag, size = 0x4, scoped, tag = 'scoped memory for tpu_custom_call.1']
    %7 = vsyncpa [#allocation4], 0
    // Predicated region
    $region2: #{tpu_custom_call.1} parent=1 // pred_check
      _
    $region3: #{tpu_custom_call.1} parent=1 // pred_check_branch
      %9 = sbr.rel (0) target = $region5
    $region4: #{tpu_custom_call.1} parent=1 // pred_region
      _
    $region5: #{tpu_custom_call.1} parent=1 // pred_fallthru
      _
    // Predicated region
    $region6: #{tpu_custom_call.1} parent=1 // pred_check
      _
    $region7: #{tpu_custom_call.1} parent=1 // pred_check_branch
      %11 = sbr.rel (0) target = $region9
    $region8: #{tpu_custom_call.1} parent=1 // pred_region
      _
    $region9: #{tpu_custom_call.1} parent=1 // pred_fallthru
      _
    %p12 = scmp.eq.s32.totalorder 0, 0
    // Predicated region
    $region10: #{tpu_custom_call.1} parent=1 // pred_check
      %p13 = pneg %p12
    $region11: #{tpu_custom_call.1} parent=1 // pred_check_branch
      %15 = sbr.rel (%p13) target = $region13
    $region12: #{tpu_custom_call.1} parent=1 // pred_region
      %vm16 = vcmask 523264
      %17 = vst.msk [vmem:[#allocation2] sm:$0xff] %vm16, 0.0
      %18 = vst.msk [vmem:[#allocation2 + $0x8] sm:$0xff] %vm16, 0.0
    $region13: #{tpu_custom_call.1} parent=1 // pred_fallthru
      _
    %v19 = vld [vmem:[#allocation2] sm:$0xff]
    %v20 = vld [vmem:[#allocation2 + $0x8] sm:$0xff]
    %v21 = vld [vmem:[%s0] sm:$0xff]
    %v22 = vld [vmem:[%s0 + $0x8] sm:$0xff]
    %v23 = vld [vmem:[%s1] sm:$0xff]
    %v24 = vld [vmem:[%s1 + $0x8] sm:$0xff]
    %v25 = vld [vmem:[%s1 + $0x10] sm:$0xff]
    %v26 = vld [vmem:[%s1 + $0x18] sm:$0xff]
    %v27 = vld [vmem:[%s1 + $0x20] sm:$0xff]
    %v28 = vld [vmem:[%s1 + $0x28] sm:$0xff]
    %v29 = vld [vmem:[%s1 + $0x30] sm:$0xff]
    %v30 = vld [vmem:[%s1 + $0x38] sm:$0xff]
    %vm31 = vcmask 261120
    %v33 = vsel %vm31, %v21, 0
    %v36 = vsel %vm31, %v22, 0
    %v39 = vsel %vm31, %v23, 0
    %v42 = vsel %vm31, %v24, 0
    %v45 = vsel %vm31, %v25, 0
    %v48 = vsel %vm31, %v26, 0
    %v51 = vsel %vm31, %v27, 0
    %v54 = vsel %vm31, %v28, 0
    %v57 = vsel %vm31, %v29, 0
    %v60 = vsel %vm31, %v30, 0
    %62 = vmatprep.subr.mxu0 0.0
    %63 = vmatpush1.xpose.msra.mxu0 %v39
    %64 = vmatprep.subr.mxu0 0.0
    %65 = vmatpush1.xpose.msra.mxu0 %v42
    %66 = vmatprep.subr.mxu0 0.0
    %67 = vmatpush1.xpose.msra.mxu0 %v45
    %68 = vmatprep.subr.mxu0 0.0
    %69 = vmatpush1.xpose.msra.mxu0 %v48
    %70 = vmatprep.subr.mxu0 0.0
    %71 = vmatpush1.xpose.msra.mxu0 %v51
    %72 = vmatprep.subr.mxu0 0.0
    %73 = vmatpush1.xpose.msra.mxu0 %v54
    %74 = vmatprep.subr.mxu0 0.0
    %75 = vmatpush1.xpose.msra.mxu0 %v57
    %76 = vmatprep.subr.mxu0 0.0
    %77 = vmatpush1.xpose.msra.mxu0 %v60
    %78 = vmatprep.subr.mxu0 0.0
    %79 = vmatpush1.xpose.msra.mxu0 0.0
    %80 = vmatprep.subr.mxu0 0.0
    %81 = vmatpush1.xpose.msra.mxu0 0.0
    %82 = vmatprep.subr.mxu0 0.0
    %83 = vmatpush1.xpose.msra.mxu0 0.0
    %84 = vmatprep.subr.mxu0 0.0
    %85 = vmatpush1.xpose.msra.mxu0 0.0
    %86 = vmatprep.subr.mxu0 0.0
    %87 = vmatpush1.xpose.msra.mxu0 0.0
    %88 = vmatprep.subr.mxu0 0.0
    %89 = vmatpush1.xpose.msra.mxu0 0.0
    %90 = vmatprep.subr.mxu0 0.0
    %91 = vmatpush1.xpose.msra.mxu0 0.0
    %92 = vmatprep.subr.mxu0 0.0
    %93 = vmatpush1.xpose.msra.mxu0 0.0
    %94 = vmatprep.subr.mxu0 0.0
    %95 = vmatpush1.xpose.msra.mxu0 0.0
    %96 = vmatprep.subr.mxu0 0.0
    %97 = vmatpush1.xpose.msra.mxu0 0.0
    %98 = vmatprep.subr.mxu0 0.0
    %99 = vmatpush1.xpose.msra.mxu0 0.0
    %100 = vmatprep.subr.mxu0 0.0
    %101 = vmatpush1.xpose.msra.mxu0 0.0
    %102 = vmatprep.subr.mxu0 0.0
    %103 = vmatpush1.xpose.msra.mxu0 0.0
    %104 = vmatprep.subr.mxu0 0.0
    %105 = vmatpush1.xpose.msra.mxu0 0.0
    %106 = vmatprep.subr.mxu0 0.0
    %107 = vmatpush1.xpose.msra.mxu0 0.0
    %108 = vmatprep.subr.mxu0 0.0
    %109 = vmatpush1.xpose.msra.mxu0 0.0
    %110 = vmatprep.subr.mxu0 0.0
    %111 = vmatpush1.xpose.msra.mxu0 0.0
    %112 = vmatprep.subr.mxu0 0.0
    %113 = vmatpush1.xpose.msra.mxu0 0.0
    %114 = vmatprep.subr.mxu0 0.0
    %115 = vmatpush1.xpose.msra.mxu0 0.0
    %116 = vmatprep.subr.mxu0 0.0
    %117 = vmatpush1.xpose.msra.mxu0 0.0
    %118 = vmatprep.subr.mxu0 0.0
    %119 = vmatpush1.xpose.msra.mxu0 0.0
    %120 = vmatprep.subr.mxu0 0.0
    %121 = vmatpush1.xpose.msra.mxu0 0.0
    %122 = vmatprep.subr.mxu0 0.0
    %123 = vmatpush1.xpose.msra.mxu0 0.0
    %124 = vmatprep.subr.mxu0 0.0
    %125 = vmatpush1.xpose.msra.mxu0 0.0
    %126 = vmatprep.mubr.f32.mxu0 0.0
    %127 = vmatmul.mubr.f32.gmra.mrb[0].mxu0 %v33
    %v128 = vpop.f32.mrb[0].mxu0
    %v129 = vadd.f32 0.0, %v128
    %v130 = vpop.f32.mrb[0].mxu0
    %131 = vmatprep.mubr.f32.mxu0 0.0
    %132 = vmatmul.mubr.f32.gmra.mrb[0].mxu0 %v36
    %v133 = vpop.f32.mrb[0].mxu0
    %v134 = vadd.f32 0.0, %v133
    %v135 = vpop.f32.mrb[0].mxu0
    %136 = vdwg.mxu0
    %v137 = vadd.f32 %v19, %v129
    %v138 = vadd.f32 %v20, %v134
    %vm139 = vcmask 523264
    %140 = vst.msk [vmem:[#allocation2] sm:$0xff] %vm139, %v137
    %141 = vst.msk [vmem:[#allocation2 + $0x8] sm:$0xff] %vm139, %v138
    // Predicated region
    $region14: #{tpu_custom_call.1} parent=1 // pred_check
      %p142 = pneg %p12
    $region15: #{tpu_custom_call.1} parent=1 // pred_check_branch
      %144 = sbr.rel (%p142) target = $region17
    $region16: #{tpu_custom_call.1} parent=1 // pred_region
      %v145 = vld [vmem:[#allocation2] sm:$0xff]
      %v146 = vld [vmem:[#allocation2 + $0x8] sm:$0xff]
      %147 = vst.msk [vmem:[#allocation3] sm:$0xff] %vm139, %v145
      %148 = vst.msk [vmem:[#allocation3 + $0x8] sm:$0xff] %vm139, %v146
    $region17: #{tpu_custom_call.1} parent=1 // pred_fallthru
      _
    // Predicated region
    $region18: #{tpu_custom_call.1} parent=1 // pred_check
      _
    $region19: #{tpu_custom_call.1} parent=1 // pred_check_branch
      %150 = sbr.rel (0) target = $region21
    $region20: #{tpu_custom_call.1} parent=1 // pred_region
      %s152 = ssub.s32 256, 256
      %153 = vsyncadd [#allocation4], %s152
      %s154 = sshll.u32 [#allocation3], 4
      %s155 = int_to_ptr.vmem [resolvable:$true] %s154
      %160 = dma.vmem_to_hbm [thread:$0]  %s155, 256, %s2, [#allocation4], 128, 128, 8
    $region21: #{tpu_custom_call.1} parent=1 // pred_fallthru
      _
    // Predicated region
    $region22: #{tpu_custom_call.1} parent=1 // pred_check
      _
    $region23: #{tpu_custom_call.1} parent=1 // pred_check_branch
      %162 = sbr.rel (0) target = $region25
    $region24: #{tpu_custom_call.1} parent=1 // pred_region
      %163 = dma.done [#allocation4], 256
    $region25: #{tpu_custom_call.1} parent=1 // pred_fallthru
      _
    %164 = vsyncpa [#allocation4], 1

</llo_original>
